<compile_context>
chip_gen: v5e
topology: v5e:2x2
jax: 0.10.0
libtpu: 0.0.40
codegen_flags: <defaults>
</compile_context>

<pallas_src>
import jax
import jax.numpy as jnp
import numpy as np
from jax.experimental import pallas as pl
from jax.experimental.pallas import tpu as pltpu


HIDDEN = 56        # logical hidden width of the torch module
HIDDEN_PAD = 64    # sublane-aligned hidden width (zero padding is exact: tanh(0)=0)
LANE = 128         # TPU lane width; batch tiles are multiples of this


def _round_up(x, m):
    return (x + m - 1) // m * m


def _orthogonal(key, shape, gain):
    """Orthogonal init following torch.nn.init.orthogonal_ semantics."""
    rows, cols = shape
    a_shape = (rows, cols) if rows >= cols else (cols, rows)
    a = jax.random.normal(key, a_shape, dtype=jnp.float32)
    q, r = jnp.linalg.qr(a)
    d = jnp.diagonal(r)
    q = q * jnp.where(d >= 0, 1.0, -1.0)        # safe sign correction (no zeros)
    if rows < cols:
        q = q.T
    return (gain * q).astype(jnp.float32)


def init_sampler_params(key, n):
    """Torch-layout (out, in) weights, zero-padded to HIDDEN_PAD; biases as (out, 1)."""
    k1, k2, k3 = jax.random.split(key, 3)
    std = float(np.sqrt(2.0))
    w1 = _orthogonal(k1, (HIDDEN, n), std)          # (56, N)
    w2 = _orthogonal(k2, (HIDDEN, HIDDEN), std)     # (56, 56)
    w3 = _orthogonal(k3, (n, HIDDEN), 0.01)         # (N, 56)

    w1p = jnp.zeros((HIDDEN_PAD, n), jnp.float32).at[:HIDDEN, :].set(w1)
    w2p = jnp.zeros((HIDDEN_PAD, HIDDEN_PAD), jnp.float32).at[:HIDDEN, :HIDDEN].set(w2)
    w3p = jnp.zeros((n, HIDDEN_PAD), jnp.float32).at[:, :HIDDEN].set(w3)
    b1p = jnp.zeros((HIDDEN_PAD, 1), jnp.float32)
    b2p = jnp.zeros((HIDDEN_PAD, 1), jnp.float32)
    b3p = jnp.zeros((n, 1), jnp.float32)
    return w1p, b1p, w2p, b2p, w3p, b3p


def _sampler_kernel(xt_ref, w1_ref, b1_ref, w2_ref, b2_ref, w3_ref, b3_ref, o_ref):
    """One batch tile, lane-dense (features x batch) orientation.

    xt_ref : (N, TB)            input tile, batch on lanes
    w*_ref : torch-layout weights (out, in), VMEM-resident across the grid
    b*_ref : (out, 1) biases, lane-broadcast
    o_ref  : (N, TB)            logits tile
    """
    xt = xt_ref[...]                                                    # (N, TB) f32
    h1 = jnp.tanh(
        jnp.dot(w1_ref[...], xt, preferred_element_type=jnp.float32) + b1_ref[...]
    )                                                                   # (64, TB)
    h2 = jnp.tanh(
        jnp.dot(w2_ref[...], h1, preferred_element_type=jnp.float32) + b2_ref[...]
    )                                                                   # (64, TB)
    logits = (
        jnp.dot(w3_ref[...], h2, preferred_element_type=jnp.float32) + b3_ref[...]
    )                                                                   # (N, TB)
    o_ref[...] = logits.astype(o_ref.dtype)


def sampler_forward(x, params, *, tb=1024):
    """x: (batch, N) float32 -> logits (batch, N) float32."""
    w1, b1, w2, b2, w3, b3 = params
    b, n = x.shape

    # Batch tile: multiple of the 128-lane width, capped at `tb` and at the
    # padded batch (single-tile launch when the whole batch fits).
    tb = max(LANE, min(tb, _round_up(b, LANE)))
    assert tb % LANE == 0
    bp = _round_up(b, tb)                       # padded batch, multiple of tb
    grid = (bp // tb,)

    # Pad batch and transpose so batch maps to lanes (lane-dense I/O).
    xt = jnp.pad(x, ((0, bp - b), (0, 0))).T    # (N, Bp)

    # Advisory cost estimate so XLA schedules this small call sensibly.
    flops = 2 * bp * (n * HIDDEN_PAD + HIDDEN_PAD * HIDDEN_PAD + HIDDEN_PAD * n)
    transcendentals = 2 * bp * HIDDEN_PAD
    bytes_accessed = 4 * (
        xt.size + bp * n
        + w1.size + w2.size + w3.size + b1.size + b2.size + b3.size
    )

    def _const(arr):
        # Full-array block whose index never changes -> stays VMEM-resident.
        return pl.BlockSpec(arr.shape, lambda i: (0, 0))

    out_t = pl.pallas_call(
        _sampler_kernel,
        out_shape=jax.ShapeDtypeStruct((n, bp), jnp.float32),
        grid=grid,
        in_specs=[
            pl.BlockSpec((n, tb), lambda i: (0, i)),    # x tile (batch on lanes)
            _const(w1), _const(b1),
            _const(w2), _const(b2),
            _const(w3), _const(b3),
        ],
        out_specs=pl.BlockSpec((n, tb), lambda i: (0, i)),
        compiler_params=pltpu.CompilerParams(
            dimension_semantics=("parallel",),          # shards batch tiles across TCs on v7x
        ),
        cost_estimate=pl.CostEstimate(
            flops=int(flops),
            transcendentals=int(transcendentals),
            bytes_accessed=int(bytes_accessed),
        ),
    )(xt, w1, b1, w2, b2, w3, b3)

    return out_t.T[:b]                                  # back to (batch, N)


def sampler_forward_ref(x, params):
    """Pure-JAX reference in the original (batch, features) torch orientation."""
    w1p, b1p, w2p, b2p, w3p, b3p = params
    w1, b1 = w1p[:HIDDEN, :], b1p[:HIDDEN, 0]
    w2, b2 = w2p[:HIDDEN, :HIDDEN], b2p[:HIDDEN, 0]
    w3, b3 = w3p[:, :HIDDEN], b3p[:, 0]
    h1 = jnp.tanh(x @ w1.T + b1)
    h2 = jnp.tanh(h1 @ w2.T + b2)
    return h2 @ w3.T + b3


if __name__ == "__main__":
    key = jax.random.PRNGKey(0)
    k_param, k_x = jax.random.split(key)

    N = 8          # LunarLander observation size for the Sampler input/output
    BATCH = 200    # small, and deliberately not a multiple of the tile (exercises padding)

    params = init_sampler_params(k_param, N)
    x = jax.random.normal(k_x, (BATCH, N), dtype=jnp.float32)

    out = sampler_forward(x, params, tb=128)   # bp=256 -> grid of 2 batch tiles
    out = jax.block_until_ready(out)

    ref = sampler_forward_ref(x, params)
    np.testing.assert_allclose(np.asarray(out), np.asarray(ref), rtol=1e-5, atol=1e-5)
    assert out.shape == (BATCH, N)

    print("KERNEL_OK")
</pallas_src>

<mosaic_0001>
module attributes {stable_mosaic.version = 11 : i64} {
  func.func @_sampler_kernel(%arg0: i32, %arg1: memref<8x128xf32, #tpu.memory_space<vmem>>, %arg2: memref<64x8xf32, #tpu.memory_space<vmem>>, %arg3: memref<64x1xf32, #tpu.memory_space<vmem>>, %arg4: memref<64x64xf32, #tpu.memory_space<vmem>>, %arg5: memref<64x1xf32, #tpu.memory_space<vmem>>, %arg6: memref<8x64xf32, #tpu.memory_space<vmem>>, %arg7: memref<8x1xf32, #tpu.memory_space<vmem>>, %arg8: memref<8x128xf32, #tpu.memory_space<vmem>>) attributes {dimension_semantics = [#tpu.dimension_semantics<parallel>], iteration_bounds = array<i64: 2>, scalar_prefetch = 0 : i64, scratch_operands = 0 : i64, tpu.core_type = #tpu.core_type<tc>, window_params = [{transform_indices = @transform_0, window_bounds = array<i64: 8, 128>}, {pipeline_mode = #tpu.pipeline_mode<synchronous>, transform_indices = @transform_1, window_bounds = array<i64: 64, 8>}, {pipeline_mode = #tpu.pipeline_mode<synchronous>, transform_indices = @transform_2, window_bounds = array<i64: 64, 1>}, {pipeline_mode = #tpu.pipeline_mode<synchronous>, transform_indices = @transform_3, window_bounds = array<i64: 64, 64>}, {pipeline_mode = #tpu.pipeline_mode<synchronous>, transform_indices = @transform_4, window_bounds = array<i64: 64, 1>}, {pipeline_mode = #tpu.pipeline_mode<synchronous>, transform_indices = @transform_5, window_bounds = array<i64: 8, 64>}, {pipeline_mode = #tpu.pipeline_mode<synchronous>, transform_indices = @transform_6, window_bounds = array<i64: 8, 1>}, {transform_indices = @transform_7, window_bounds = array<i64: 8, 128>}]} {
    %c0 = arith.constant 0 : index
    %c0_0 = arith.constant 0 : index
    %0 = vector.load %arg1[%c0, %c0_0] : memref<8x128xf32, #tpu.memory_space<vmem>>, vector<8x128xf32>
    %c0_1 = arith.constant 0 : index
    %c0_2 = arith.constant 0 : index
    %1 = vector.load %arg2[%c0_1, %c0_2] : memref<64x8xf32, #tpu.memory_space<vmem>>, vector<64x8xf32>
    %cst = arith.constant dense<0.000000e+00> : vector<64x128xf32>
    %2 = tpu.matmul %1, %0, %cst {dimension_numbers = #tpu.dot_dimension_numbers<[1], [0], [0], [1], [0, 0, 1, 1], [], []>} : vector<64x8xf32>, vector<8x128xf32>, vector<64x128xf32> -> vector<64x128xf32>
    %c0_3 = arith.constant 0 : index
    %c0_4 = arith.constant 0 : index
    %3 = vector.load %arg3[%c0_3, %c0_4] : memref<64x1xf32, #tpu.memory_space<vmem>>, vector<64x1xf32>
    %4 = vector.broadcast %3 : vector<64x1xf32> to vector<64x128xf32>
    %5 = arith.addf %2, %4 : vector<64x128xf32>
    %6 = math.tanh %5 : vector<64x128xf32>
    %c0_5 = arith.constant 0 : index
    %c0_6 = arith.constant 0 : index
    %7 = vector.load %arg4[%c0_5, %c0_6] : memref<64x64xf32, #tpu.memory_space<vmem>>, vector<64x64xf32>
    %cst_7 = arith.constant dense<0.000000e+00> : vector<64x128xf32>
    %8 = tpu.matmul %7, %6, %cst_7 {dimension_numbers = #tpu.dot_dimension_numbers<[1], [0], [0], [1], [0, 0, 1, 1], [], []>} : vector<64x64xf32>, vector<64x128xf32>, vector<64x128xf32> -> vector<64x128xf32>
    %c0_8 = arith.constant 0 : index
    %c0_9 = arith.constant 0 : index
    %9 = vector.load %arg5[%c0_8, %c0_9] : memref<64x1xf32, #tpu.memory_space<vmem>>, vector<64x1xf32>
    %10 = vector.broadcast %9 : vector<64x1xf32> to vector<64x128xf32>
    %11 = arith.addf %8, %10 : vector<64x128xf32>
    %12 = math.tanh %11 : vector<64x128xf32>
    %c0_10 = arith.constant 0 : index
    %c0_11 = arith.constant 0 : index
    %13 = vector.load %arg6[%c0_10, %c0_11] : memref<8x64xf32, #tpu.memory_space<vmem>>, vector<8x64xf32>
    %cst_12 = arith.constant dense<0.000000e+00> : vector<8x128xf32>
    %14 = tpu.matmul %13, %12, %cst_12 {dimension_numbers = #tpu.dot_dimension_numbers<[1], [0], [0], [1], [0, 0, 1, 1], [], []>} : vector<8x64xf32>, vector<64x128xf32>, vector<8x128xf32> -> vector<8x128xf32>
    %c0_13 = arith.constant 0 : index
    %c0_14 = arith.constant 0 : index
    %15 = vector.load %arg7[%c0_13, %c0_14] : memref<8x1xf32, #tpu.memory_space<vmem>>, vector<8x1xf32>
    %16 = vector.broadcast %15 : vector<8x1xf32> to vector<8x128xf32>
    %17 = arith.addf %14, %16 : vector<8x128xf32>
    %c0_15 = arith.constant 0 : index
    %c0_16 = arith.constant 0 : index
    %18 = vector.load %arg8[%c0_15, %c0_16] : memref<8x128xf32, #tpu.memory_space<vmem>>, vector<8x128xf32>
    tpu.vector_store %arg8[%c0_15, %c0_16], %17 {strides = array<i32>} : memref<8x128xf32, #tpu.memory_space<vmem>>, vector<8x128xf32>,
    return
  }
  func.func @transform_0(%arg0: i32) -> (i32, i32) {
    %c0_i32 = arith.constant 0 : i32
    %c0_i32_0 = arith.constant 0 : i32
    return %c0_i32, %arg0 : i32, i32
  }
  func.func @transform_1(%arg0: i32) -> (i32, i32) {
    %c0_i32 = arith.constant 0 : i32
    %c0_i32_0 = arith.constant 0 : i32
    %c0_i32_1 = arith.constant 0 : i32
    return %c0_i32, %c0_i32_0 : i32, i32
  }
  func.func @transform_2(%arg0: i32) -> (i32, i32) {
    %c0_i32 = arith.constant 0 : i32
    %c0_i32_0 = arith.constant 0 : i32
    %c0_i32_1 = arith.constant 0 : i32
    return %c0_i32, %c0_i32_0 : i32, i32
  }
  func.func @transform_3(%arg0: i32) -> (i32, i32) {
    %c0_i32 = arith.constant 0 : i32
    %c0_i32_0 = arith.constant 0 : i32
    %c0_i32_1 = arith.constant 0 : i32
    return %c0_i32, %c0_i32_0 : i32, i32
  }
  func.func @transform_4(%arg0: i32) -> (i32, i32) {
    %c0_i32 = arith.constant 0 : i32
    %c0_i32_0 = arith.constant 0 : i32
    %c0_i32_1 = arith.constant 0 : i32
    return %c0_i32, %c0_i32_0 : i32, i32
  }
  func.func @transform_5(%arg0: i32) -> (i32, i32) {
    %c0_i32 = arith.constant 0 : i32
    %c0_i32_0 = arith.constant 0 : i32
    %c0_i32_1 = arith.constant 0 : i32
    return %c0_i32, %c0_i32_0 : i32, i32
  }
  func.func @transform_6(%arg0: i32) -> (i32, i32) {
    %c0_i32 = arith.constant 0 : i32
    %c0_i32_0 = arith.constant 0 : i32
    %c0_i32_1 = arith.constant 0 : i32
    return %c0_i32, %c0_i32_0 : i32, i32
  }
  func.func @transform_7(%arg0: i32) -> (i32, i32) {
    %c0_i32 = arith.constant 0 : i32
    %c0_i32_0 = arith.constant 0 : i32
    return %c0_i32, %arg0 : i32, i32
  }
}

</mosaic_0001>

<llo_original>
// kernel: tpu_custom_call.1
$region0: #{tpu_custom_call.1}
  #allocation0 [shape = 'u32[]', space=smem, size = 0x4, offset = 0x4, fixed_abs, tag = 'smem constant byte address 0x4 - core index']
  #allocation1 [shape = 'u32[72,128]{1,0:T(1,128)}', space=vmem, size = 0x9000, scoped, tag = 'internal scratch']
  %s0 = inlined_call_operand.vmem [shape: f32[8,256], index: 0, kind: input, shape index: {}]
  %s1 = inlined_call_operand.vmem [shape: f32[64,8], index: 1, kind: input, shape index: {}]
  %s2 = inlined_call_operand.vmem [shape: f32[64,1], index: 2, kind: input, shape index: {}]
  %s3 = inlined_call_operand.vmem [shape: f32[64,64], index: 3, kind: input, shape index: {}]
  %s4 = inlined_call_operand.vmem [shape: f32[64,1], index: 4, kind: input, shape index: {}]
  %s5 = inlined_call_operand.vmem [shape: f32[8,64], index: 5, kind: input, shape index: {}]
  %s6 = inlined_call_operand.vmem [shape: f32[8,1], index: 6, kind: input, shape index: {}]
  %s7 = inlined_call_operand.hbm [shape: f32[8,256], index: 7, kind: output, shape index: {}]
  %s8 = sld [smem:[#allocation0]]
  $region61: #{tpu_custom_call.1} parent=0
    _
  %s10 = ssub.s32 1, %s8
  %s11 = scalar_select 0, %s10, %s8
  $region1: #{tpu_custom_call.1} parent=0
    #allocation2 [shape = 'u8[8192]{0}', space=vmem, size = 0x2000, scoped, tag = 'output window, operand 0']
    #allocation3 [shape = 's32[2]{0}', space=sflag, size = 0x8, scoped, tag = 'scoped memory for tpu_custom_call.1']
    %12 = vsyncpa [#allocation3], 0
    %s13 = scalar_lea.sflag [#allocation3], 1
    %14 = vsyncpa %s13, 0
    loop: start=0, step=1, limit=4
    $region2: #{tpu_custom_call.1} parent=1 // loop_pre_header
      _
    $region3: #{tpu_custom_call.1} parent=1 // loop_header
      %s16 = sphi 0, %s20
      %p17 = scmp.ge.s32.totalorder %s16, 4
      %s26 = sphi 0, %s28
      %s29 = sphi 0, %s26
      %s30 = sphi 0, %s29
      %s46 = sphi 0, %s30
      %s50 = sphi 0, %s50
      %s52 = sphi 0, %s50
      %s53 = sphi 0, %s52
      %s67 = sphi 0, %s53
      %s71 = sphi 0, %s71
      %s73 = sphi 0, %s71
      %s74 = sphi 0, %s73
      %s88 = sphi 0, %s74
      %s92 = sphi 0, %s92
      %s94 = sphi 0, %s92
      %s95 = sphi 0, %s94
      %s109 = sphi 0, %s95
      %s113 = sphi 0, %s113
      %s115 = sphi 0, %s113
      %s116 = sphi 0, %s115
      %s130 = sphi 0, %s116
      %s134 = sphi 0, %s134
      %s136 = sphi 0, %s134
      %s137 = sphi 0, %s136
      %s151 = sphi 0, %s137
      %s155 = sphi 0, %s155
      %s157 = sphi 0, %s155
      %s158 = sphi 0, %s157
      %s172 = sphi 0, %s158
      %s178 = sphi 0, %s180
      %s181 = sphi 0, %s178
      %s182 = sphi 0, %s181
      %s198 = sphi 0, %s182
    $region4: #{tpu_custom_call.1} parent=1 // loop_header_branch
      %19 = sbr.rel (%p17) target = $region8
    $region5: #{tpu_custom_call.1} parent=1 // loop_body
      %s21 = ssub.s32 %s16, 1
      %s22 = ssub.s32 %s16, 2
      %s23 = sadd.s32 %s16, 1
      %s24 = ssub.s32 %s16, %s23
      %p25 = scmp.eq.s32.totalorder %s24, 0
      %s27 = sadd.s32 %s26, 1
      %s28 = scalar_select %p25, %s26, %s27
      %p31 = pneg %p25
      %p32 = scmp.eq.s32.totalorder %s16, 1
      %p33 = por %p31, %p32
      %p34 = scmp.ne.s32.totalorder %s26, %s29
      %p35 = scmp.eq.s32.totalorder %s16, 0
      %p36 = por %p34, %p35
      %p37 = scmp.ne.s32.totalorder %s26, %s29
      %p38 = scmp.eq.s32.totalorder %s21, 1
      %p39 = por %p37, %p38
      %p40 = scmp.ne.s32.totalorder %s29, %s30
      %p41 = scmp.eq.s32.totalorder %s21, 0
      %p42 = por %p40, %p41
      %p43 = scmp.ne.s32.totalorder %s29, %s30
      %p44 = scmp.eq.s32.totalorder %s22, 1
      %p45 = por %p43, %p44
      %p47 = scmp.ne.s32.totalorder %s30, %s46
      %p48 = scmp.eq.s32.totalorder %s22, 0
      %p49 = por %p47, %p48
      %s51 = sadd.s32 %s50, 1
      %p54 = scmp.eq.s32.totalorder %s16, 1
      %p55 = scmp.ne.s32.totalorder %s50, %s52
      %p56 = scmp.eq.s32.totalorder %s16, 0
      %p57 = por %p55, %p56
      %p58 = scmp.ne.s32.totalorder %s50, %s52
      %p59 = scmp.eq.s32.totalorder %s21, 1
      %p60 = por %p58, %p59
      %p61 = scmp.ne.s32.totalorder %s52, %s53
      %p62 = scmp.eq.s32.totalorder %s21, 0
      %p63 = por %p61, %p62
      %p64 = scmp.ne.s32.totalorder %s52, %s53
      %p65 = scmp.eq.s32.totalorder %s22, 1
      %p66 = por %p64, %p65
      %p68 = scmp.ne.s32.totalorder %s53, %s67
      %p69 = scmp.eq.s32.totalorder %s22, 0
      %p70 = por %p68, %p69
      %s72 = sadd.s32 %s71, 1
      %p75 = scmp.eq.s32.totalorder %s16, 1
      %p76 = scmp.ne.s32.totalorder %s71, %s73
      %p77 = scmp.eq.s32.totalorder %s16, 0
      %p78 = por %p76, %p77
      %p79 = scmp.ne.s32.totalorder %s71, %s73
      %p80 = scmp.eq.s32.totalorder %s21, 1
      %p81 = por %p79, %p80
      %p82 = scmp.ne.s32.totalorder %s73, %s74
      %p83 = scmp.eq.s32.totalorder %s21, 0
      %p84 = por %p82, %p83
      %p85 = scmp.ne.s32.totalorder %s73, %s74
      %p86 = scmp.eq.s32.totalorder %s22, 1
      %p87 = por %p85, %p86
      %p89 = scmp.ne.s32.totalorder %s74, %s88
      %p90 = scmp.eq.s32.totalorder %s22, 0
      %p91 = por %p89, %p90
      %s93 = sadd.s32 %s92, 1
      %p96 = scmp.eq.s32.totalorder %s16, 1
      %p97 = scmp.ne.s32.totalorder %s92, %s94
      %p98 = scmp.eq.s32.totalorder %s16, 0
      %p99 = por %p97, %p98
      %p100 = scmp.ne.s32.totalorder %s92, %s94
      %p101 = scmp.eq.s32.totalorder %s21, 1
      %p102 = por %p100, %p101
      %p103 = scmp.ne.s32.totalorder %s94, %s95
      %p104 = scmp.eq.s32.totalorder %s21, 0
      %p105 = por %p103, %p104
      %p106 = scmp.ne.s32.totalorder %s94, %s95
      %p107 = scmp.eq.s32.totalorder %s22, 1
      %p108 = por %p106, %p107
      %p110 = scmp.ne.s32.totalorder %s95, %s109
      %p111 = scmp.eq.s32.totalorder %s22, 0
      %p112 = por %p110, %p111
      %s114 = sadd.s32 %s113, 1
      %p117 = scmp.eq.s32.totalorder %s16, 1
      %p118 = scmp.ne.s32.totalorder %s113, %s115
      %p119 = scmp.eq.s32.totalorder %s16, 0
      %p120 = por %p118, %p119
      %p121 = scmp.ne.s32.totalorder %s113, %s115
      %p122 = scmp.eq.s32.totalorder %s21, 1
      %p123 = por %p121, %p122
      %p124 = scmp.ne.s32.totalorder %s115, %s116
      %p125 = scmp.eq.s32.totalorder %s21, 0
      %p126 = por %p124, %p125
      %p127 = scmp.ne.s32.totalorder %s115, %s116
      %p128 = scmp.eq.s32.totalorder %s22, 1
      %p129 = por %p127, %p128
      %p131 = scmp.ne.s32.totalorder %s116, %s130
      %p132 = scmp.eq.s32.totalorder %s22, 0
      %p133 = por %p131, %p132
      %s135 = sadd.s32 %s134, 1
      %p138 = scmp.eq.s32.totalorder %s16, 1
      %p139 = scmp.ne.s32.totalorder %s134, %s136
      %p140 = scmp.eq.s32.totalorder %s16, 0
      %p141 = por %p139, %p140
      %p142 = scmp.ne.s32.totalorder %s134, %s136
      %p143 = scmp.eq.s32.totalorder %s21, 1
      %p144 = por %p142, %p143
      %p145 = scmp.ne.s32.totalorder %s136, %s137
      %p146 = scmp.eq.s32.totalorder %s21, 0
      %p147 = por %p145, %p146
      %p148 = scmp.ne.s32.totalorder %s136, %s137
      %p149 = scmp.eq.s32.totalorder %s22, 1
      %p150 = por %p148, %p149
      %p152 = scmp.ne.s32.totalorder %s137, %s151
      %p153 = scmp.eq.s32.totalorder %s22, 0
      %p154 = por %p152, %p153
      %s156 = sadd.s32 %s155, 1
      %p159 = scmp.eq.s32.totalorder %s16, 1
      %p160 = scmp.ne.s32.totalorder %s155, %s157
      %p161 = scmp.eq.s32.totalorder %s16, 0
      %p162 = por %p160, %p161
      %p163 = scmp.ne.s32.totalorder %s155, %s157
      %p164 = scmp.eq.s32.totalorder %s21, 1
      %p165 = por %p163, %p164
      %p166 = scmp.ne.s32.totalorder %s157, %s158
      %p167 = scmp.eq.s32.totalorder %s21, 0
      %p168 = por %p166, %p167
      %p169 = scmp.ne.s32.totalorder %s157, %s158
      %p170 = scmp.eq.s32.totalorder %s22, 1
      %p171 = por %p169, %p170
      %p173 = scmp.ne.s32.totalorder %s158, %s172
      %p174 = scmp.eq.s32.totalorder %s22, 0
      %p175 = por %p173, %p174
      %s176 = ssub.s32 %s16, %s23
      %p177 = scmp.eq.s32.totalorder %s176, 0
      %s179 = sadd.s32 %s178, 1
      %s180 = scalar_select %p177, %s178, %s179
      %p183 = pneg %p177
      %p184 = scmp.eq.s32.totalorder %s16, 1
      %p185 = por %p183, %p184
      %p186 = scmp.ne.s32.totalorder %s178, %s181
      %p187 = scmp.eq.s32.totalorder %s16, 0
      %p188 = por %p186, %p187
      %p189 = scmp.ne.s32.totalorder %s178, %s181
      %p190 = scmp.eq.s32.totalorder %s21, 1
      %p191 = por %p189, %p190
      %p192 = scmp.ne.s32.totalorder %s181, %s182
      %p193 = scmp.eq.s32.totalorder %s21, 0
      %p194 = por %p192, %p193
      %p195 = scmp.ne.s32.totalorder %s181, %s182
      %p196 = scmp.eq.s32.totalorder %s22, 1
      %p197 = por %p195, %p196
      %p199 = scmp.ne.s32.totalorder %s182, %s198
      %p200 = scmp.eq.s32.totalorder %s22, 0
      %p201 = por %p199, %p200
      %p202 = scmp.le.s32.totalorder 1, %s16
      %p203 = scmp.lt.s32.totalorder %s16, 3
      %p204 = pnand %p202, %p203
      %p205 = pneg %p204
      // Predicated region
      $region9: #{tpu_custom_call.1} parent=5 // pred_check
        _
      $region10: #{tpu_custom_call.1} parent=5 // pred_check_branch
        %207 = sbr.rel (%p204) target = $region12
      $region11: #{tpu_custom_call.1} parent=5 // pred_region
        %s208 = ssub.s32 %s16, 1
        // Predicated region
        $region13: #{tpu_custom_call.1} parent=11 // pred_check
          %p209 = pneg %p63
        $region14: #{tpu_custom_call.1} parent=11 // pred_check_branch
          %211 = sbr.rel (%p209) target = $region16
        $region15: #{tpu_custom_call.1} parent=11 // pred_region
          _
        $region16: #{tpu_custom_call.1} parent=11 // pred_fallthru
          _
        // Predicated region
        $region17: #{tpu_custom_call.1} parent=11 // pred_check
          %p212 = pneg %p84
        $region18: #{tpu_custom_call.1} parent=11 // pred_check_branch
          %214 = sbr.rel (%p212) target = $region20
        $region19: #{tpu_custom_call.1} parent=11 // pred_region
          _
        $region20: #{tpu_custom_call.1} parent=11 // pred_fallthru
          _
        // Predicated region
        $region21: #{tpu_custom_call.1} parent=11 // pred_check
          %p215 = pneg %p105
        $region22: #{tpu_custom_call.1} parent=11 // pred_check_branch
          %217 = sbr.rel (%p215) target = $region24
        $region23: #{tpu_custom_call.1} parent=11 // pred_region
          _
        $region24: #{tpu_custom_call.1} parent=11 // pred_fallthru
          _
        // Predicated region
        $region25: #{tpu_custom_call.1} parent=11 // pred_check
          %p218 = pneg %p126
        $region26: #{tpu_custom_call.1} parent=11 // pred_check_branch
          %220 = sbr.rel (%p218) target = $region28
        $region27: #{tpu_custom_call.1} parent=11 // pred_region
          _
        $region28: #{tpu_custom_call.1} parent=11 // pred_fallthru
          _
        // Predicated region
        $region29: #{tpu_custom_call.1} parent=11 // pred_check
          %p221 = pneg %p147
        $region30: #{tpu_custom_call.1} parent=11 // pred_check_branch
          %223 = sbr.rel (%p221) target = $region32
        $region31: #{tpu_custom_call.1} parent=11 // pred_region
          _
        $region32: #{tpu_custom_call.1} parent=11 // pred_fallthru
          _
        // Predicated region
        $region33: #{tpu_custom_call.1} parent=11 // pred_check
          %p224 = pneg %p168
        $region34: #{tpu_custom_call.1} parent=11 // pred_check_branch
          %226 = sbr.rel (%p224) target = $region36
        $region35: #{tpu_custom_call.1} parent=11 // pred_region
          _
        $region36: #{tpu_custom_call.1} parent=11 // pred_fallthru
          _
      $region12: #{tpu_custom_call.1} parent=5 // pred_fallthru
        _
      %p227 = scmp.lt.s32.totalorder %s16, 2
      // Predicated region
      $region37: #{tpu_custom_call.1} parent=5 // pred_check
        %p228 = pneg %p227
      $region38: #{tpu_custom_call.1} parent=5 // pred_check_branch
        %230 = sbr.rel (%p228) target = $region40
      $region39: #{tpu_custom_call.1} parent=5 // pred_region
        // Predicated region
        $region41: #{tpu_custom_call.1} parent=39 // pred_check
          %p231 = pneg %p36
        $region42: #{tpu_custom_call.1} parent=39 // pred_check_branch
          %233 = sbr.rel (%p231) target = $region44
        $region43: #{tpu_custom_call.1} parent=39 // pred_region
          %p234 = scmp.lt.s32.totalorder %s16, 1
          %s235 = scalar_select %p234, %s16, 1
          %s236 = smul.addr %s235, 8
          %s237 = scalar_lea.vmem %s0, %s236
        $region44: #{tpu_custom_call.1} parent=39 // pred_fallthru
          _
      $region40: #{tpu_custom_call.1} parent=5 // pred_fallthru
        _
      %p238 = scmp.le.s32.totalorder 1, %s16
      %p239 = scmp.lt.s32.totalorder %s16, 3
      %p240 = pnand %p238, %p239
      %p241 = pneg %p240
      // Predicated region
      $region45: #{tpu_custom_call.1} parent=5 // pred_check
        _
      $region46: #{tpu_custom_call.1} parent=5 // pred_check_branch
        %243 = sbr.rel (%p240) target = $region48
      $region47: #{tpu_custom_call.1} parent=5 // pred_region
        %s244 = ssub.s32 %s16, 1
        %p245 = scmp.lt.s32.totalorder %s21, 1
        %s246 = scalar_select %p245, %s21, 1
        %s247 = smul.addr %s246, 8
        %s248 = scalar_lea.vmem %s0, %s247
        %p249 = pneg %p42
        %p250 = pneg %p39
        %p251 = pneg %p63
        %p252 = pneg %p60
        %p253 = pneg %p84
        %p254 = pneg %p81
        %p255 = pneg %p105
        %p256 = pneg %p102
        %p257 = pneg %p126
        %p258 = pneg %p123
        %p259 = pneg %p147
        %p260 = pneg %p144
        %p261 = pneg %p168
        %p262 = pneg %p165
        %p263 = pneg %p194
        %p264 = pneg %p191
        %s265 = sand.u32 %s181, 1
        %s266 = scalar_lea.sflag [#allocation3], %s265
        %s267 = sand.u32 %s181, 1
        %s268 = smul.addr %s267, 8
        %s269 = scalar_lea.vmem [#allocation2], %s268
        %p270 = scmp.lt.s32.totalorder %s21, 1
        %s271 = scalar_select %p270, %s21, 1
        %s272 = smul.addr %s271, 8
        %s273 = scalar_lea.vmem %s0, %s272
        %v274 = vld [vmem:[%s273] sm:$0xff]
        %v275 = vld [vmem:[%s1] sm:$0xff]
        %v276 = vld [vmem:[%s1 + $0x8] sm:$0xff]
        %v277 = vld [vmem:[%s1 + $0x10] sm:$0xff]
        %v278 = vld [vmem:[%s1 + $0x18] sm:$0xff]
        %v279 = vld [vmem:[%s1 + $0x20] sm:$0xff]
        %v280 = vld [vmem:[%s1 + $0x28] sm:$0xff]
        %v281 = vld [vmem:[%s1 + $0x30] sm:$0xff]
        %v282 = vld [vmem:[%s1 + $0x38] sm:$0xff]
        %v283 = vld [vmem:[%s2] sm:$0xff]
        %v284 = vld [vmem:[%s2 + $0x8] sm:$0xff]
        %v285 = vld [vmem:[%s2 + $0x10] sm:$0xff]
        %v286 = vld [vmem:[%s2 + $0x18] sm:$0xff]
        %v287 = vld [vmem:[%s2 + $0x20] sm:$0xff]
        %v288 = vld [vmem:[%s2 + $0x28] sm:$0xff]
        %v289 = vld [vmem:[%s2 + $0x30] sm:$0xff]
        %v290 = vld [vmem:[%s2 + $0x38] sm:$0xff]
        %292 = vset.pattern.permute.xlu0 0
        %293 = vperm.xlu0 %292, %v283
        %v294 = vpop.permute.xlu0 %293
        %297 = vset.pattern.permute.xlu0 0
        %298 = vperm.xlu0 %297, %v284
        %v299 = vpop.permute.xlu0 %298
        %302 = vset.pattern.permute.xlu0 0
        %303 = vperm.xlu0 %302, %v285
        %v304 = vpop.permute.xlu0 %303
        %307 = vset.pattern.permute.xlu0 0
        %308 = vperm.xlu0 %307, %v286
        %v309 = vpop.permute.xlu0 %308
        %312 = vset.pattern.permute.xlu0 0
        %313 = vperm.xlu0 %312, %v287
        %v314 = vpop.permute.xlu0 %313
        %317 = vset.pattern.permute.xlu0 0
        %318 = vperm.xlu0 %317, %v288
        %v319 = vpop.permute.xlu0 %318
        %322 = vset.pattern.permute.xlu0 0
        %323 = vperm.xlu0 %322, %v289
        %v324 = vpop.permute.xlu0 %323
        %327 = vset.pattern.permute.xlu0 0
        %328 = vperm.xlu0 %327, %v290
        %v329 = vpop.permute.xlu0 %328
        %vm331 = vcmask 64512
        %v333 = vsel %vm331, %v275, 0
        %v336 = vsel %vm331, %v276, 0
        %v339 = vsel %vm331, %v277, 0
        %v342 = vsel %vm331, %v278, 0
        %v345 = vsel %vm331, %v279, 0
        %v348 = vsel %vm331, %v280, 0
        %v351 = vsel %vm331, %v281, 0
        %v354 = vsel %vm331, %v282, 0
        %356 = vmatpush.msra.mxu0 0.0
        %357 = vmatpush.msra.mxu0 0.0
        %358 = vmatpush.msra.mxu0 0.0
        %359 = vmatpush.msra.mxu0 0.0
        %360 = vmatpush.msra.mxu0 0.0
        %361 = vmatpush.msra.mxu0 0.0
        %362 = vmatpush.msra.mxu0 0.0
        %363 = vmatpush.msra.mxu0 0.0
        %364 = vmatpush.msra.mxu0 0.0
        %365 = vmatpush.msra.mxu0 0.0
        %366 = vmatpush.msra.mxu0 0.0
        %367 = vmatpush.msra.mxu0 0.0
        %368 = vmatpush.msra.mxu0 0.0
        %369 = vmatpush.msra.mxu0 0.0
        %370 = vmatpush.msra.mxu0 0.0
        %371 = vmatpush.msra.mxu0 %v274
        %372 = vmatmul.f32.gmra.mxu0 %v333
        %v373 = vpop.f32.mrf.mxu0
        %v374 = vadd.f32 %v294, %v373
        %375 = vmatmul.f32.gmra.mxu0 %v336
        %v376 = vpop.f32.mrf.mxu0
        %v377 = vadd.f32 %v299, %v376
        %378 = vmatmul.f32.gmra.mxu0 %v339
        %v379 = vpop.f32.mrf.mxu0
        %v380 = vadd.f32 %v304, %v379
        %381 = vmatmul.f32.gmra.mxu0 %v342
        %v382 = vpop.f32.mrf.mxu0
        %v383 = vadd.f32 %v309, %v382
        %384 = vmatmul.f32.gmra.mxu0 %v345
        %v385 = vpop.f32.mrf.mxu0
        %v386 = vadd.f32 %v314, %v385
        %387 = vmatmul.f32.gmra.mxu0 %v348
        %v388 = vpop.f32.mrf.mxu0
        %v389 = vadd.f32 %v319, %v388
        %390 = vmatmul.f32.gmra.mxu0 %v351
        %v391 = vpop.f32.mrf.mxu0
        %v392 = vadd.f32 %v324, %v391
        %393 = vmatmul.f32.gmra.mxu0 %v354
        %v394 = vpop.f32.mrf.mxu0
        %v395 = vadd.f32 %v329, %v394
        %396 = vdwg.mxu0
        %v397 = vtanh.pop %v374
        %v398 = vtanh.pop %v377
        %v399 = vtanh.pop %v380
        %v400 = vtanh.pop %v383
        %v401 = vtanh.pop %v386
        %v402 = vtanh.pop %v389
        %v403 = vtanh.pop %v392
        %v404 = vtanh.pop %v395
        %v405 = vld [vmem:[%s3] sm:$0xff]
        %v406 = vld [vmem:[%s3 + $0x8] sm:$0xff]
        %v407 = vld [vmem:[%s3 + $0x10] sm:$0xff]
        %v408 = vld [vmem:[%s3 + $0x18] sm:$0xff]
        %v409 = vld [vmem:[%s3 + $0x20] sm:$0xff]
        %v410 = vld [vmem:[%s3 + $0x28] sm:$0xff]
        %v411 = vld [vmem:[%s3 + $0x30] sm:$0xff]
        %v412 = vld [vmem:[%s3 + $0x38] sm:$0xff]
        %v413 = vld [vmem:[%s4] sm:$0xff]
        %v414 = vld [vmem:[%s4 + $0x8] sm:$0xff]
        %v415 = vld [vmem:[%s4 + $0x10] sm:$0xff]
        %v416 = vld [vmem:[%s4 + $0x18] sm:$0xff]
        %v417 = vld [vmem:[%s4 + $0x20] sm:$0xff]
        %v418 = vld [vmem:[%s4 + $0x28] sm:$0xff]
        %v419 = vld [vmem:[%s4 + $0x30] sm:$0xff]
        %v420 = vld [vmem:[%s4 + $0x38] sm:$0xff]
        %422 = vset.pattern.permute.xlu0 0
        %423 = vperm.xlu0 %422, %v413
        %v424 = vpop.permute.xlu0 %423
        %427 = vset.pattern.permute.xlu0 0
        %428 = vperm.xlu0 %427, %v414
        %v429 = vpop.permute.xlu0 %428
        %432 = vset.pattern.permute.xlu0 0
        %433 = vperm.xlu0 %432, %v415
        %v434 = vpop.permute.xlu0 %433
        %437 = vset.pattern.permute.xlu0 0
        %438 = vperm.xlu0 %437, %v416
        %v439 = vpop.permute.xlu0 %438
        %442 = vset.pattern.permute.xlu0 0
        %443 = vperm.xlu0 %442, %v417
        %v444 = vpop.permute.xlu0 %443
        %447 = vset.pattern.permute.xlu0 0
        %448 = vperm.xlu0 %447, %v418
        %v449 = vpop.permute.xlu0 %448
        %452 = vset.pattern.permute.xlu0 0
        %453 = vperm.xlu0 %452, %v419
        %v454 = vpop.permute.xlu0 %453
        %457 = vset.pattern.permute.xlu0 0
        %458 = vperm.xlu0 %457, %v420
        %v459 = vpop.permute.xlu0 %458
        %vm461 = vcmask 523264
        %v463 = vsel %vm461, %v405, 0
        %v466 = vsel %vm461, %v406, 0
        %v469 = vsel %vm461, %v407, 0
        %v472 = vsel %vm461, %v408, 0
        %v475 = vsel %vm461, %v409, 0
        %v478 = vsel %vm461, %v410, 0
        %v481 = vsel %vm461, %v411, 0
        %v484 = vsel %vm461, %v412, 0
        %486 = vmatpush.msra.mxu0 0.0
        %487 = vmatpush.msra.mxu0 0.0
        %488 = vmatpush.msra.mxu0 0.0
        %489 = vmatpush.msra.mxu0 0.0
        %490 = vmatpush.msra.mxu0 0.0
        %491 = vmatpush.msra.mxu0 0.0
        %492 = vmatpush.msra.mxu0 0.0
        %493 = vmatpush.msra.mxu0 0.0
        %494 = vmatpush.msra.mxu0 %v404
        %495 = vmatpush.msra.mxu0 %v403
        %496 = vmatpush.msra.mxu0 %v402
        %497 = vmatpush.msra.mxu0 %v401
        %498 = vmatpush.msra.mxu0 %v400
        %499 = vmatpush.msra.mxu0 %v399
        %500 = vmatpush.msra.mxu0 %v398
        %501 = vmatpush.msra.mxu0 %v397
        %502 = vmatmul.f32.gmra.mxu0 %v463
        %v503 = vpop.f32.mrf.mxu0
        %v504 = vadd.f32 %v424, %v503
        %505 = vmatmul.f32.gmra.mxu0 %v466
        %v506 = vpop.f32.mrf.mxu0
        %v507 = vadd.f32 %v429, %v506
        %508 = vmatmul.f32.gmra.mxu0 %v469
        %v509 = vpop.f32.mrf.mxu0
        %v510 = vadd.f32 %v434, %v509
        %511 = vmatmul.f32.gmra.mxu0 %v472
        %v512 = vpop.f32.mrf.mxu0
        %v513 = vadd.f32 %v439, %v512
        %514 = vmatmul.f32.gmra.mxu0 %v475
        %v515 = vpop.f32.mrf.mxu0
        %v516 = vadd.f32 %v444, %v515
        %517 = vmatmul.f32.gmra.mxu0 %v478
        %v518 = vpop.f32.mrf.mxu0
        %v519 = vadd.f32 %v449, %v518
        %520 = vmatmul.f32.gmra.mxu0 %v481
        %v521 = vpop.f32.mrf.mxu0
        %v522 = vadd.f32 %v454, %v521
        %523 = vmatmul.f32.gmra.mxu0 %v484
        %v524 = vpop.f32.mrf.mxu0
        %v525 = vadd.f32 %v459, %v524
        %526 = vdwg.mxu0
        %v527 = vtanh.pop %v504
        %v528 = vtanh.pop %v507
        %v529 = vtanh.pop %v510
        %v530 = vtanh.pop %v513
        %v531 = vtanh.pop %v516
        %v532 = vtanh.pop %v519
        %v533 = vtanh.pop %v522
        %v534 = vtanh.pop %v525
        %v535 = vld [vmem:[%s5] sm:$0xff]
        %v536 = vld [vmem:[%s6] sm:$0xff]
        %538 = vset.pattern.permute.xlu0 0
        %539 = vperm.xlu0 %538, %v536
        %v540 = vpop.permute.xlu0 %539
        %v543 = vsel %vm461, %v535, 0
        %545 = vmatpush.msra.mxu0 0.0
        %546 = vmatpush.msra.mxu0 0.0
        %547 = vmatpush.msra.mxu0 0.0
        %548 = vmatpush.msra.mxu0 0.0
        %549 = vmatpush.msra.mxu0 0.0
        %550 = vmatpush.msra.mxu0 0.0
        %551 = vmatpush.msra.mxu0 0.0
        %552 = vmatpush.msra.mxu0 0.0
        %553 = vmatpush.msra.mxu0 %v534
        %554 = vmatpush.msra.mxu0 %v533
        %555 = vmatpush.msra.mxu0 %v532
        %556 = vmatpush.msra.mxu0 %v531
        %557 = vmatpush.msra.mxu0 %v530
        %558 = vmatpush.msra.mxu0 %v529
        %559 = vmatpush.msra.mxu0 %v528
        %560 = vmatpush.msra.mxu0 %v527
        %561 = vmatmul.f32.gmra.mxu0 %v543
        %v562 = vpop.f32.mrf.mxu0
        %v563 = vadd.f32 %v540, %v562
        %564 = vdwg.mxu0
        %565 = vst [vmem:[%s269] sm:$0xff] %v563
        %s566 = sand.u32 %s181, 1
        %s567 = scalar_lea.sflag [#allocation3], %s566
        %s568 = sand.u32 %s181, 1
        %s569 = smul.addr %s568, 8
        %s570 = scalar_lea.vmem [#allocation2], %s569
        // Predicated region
        $region49: #{tpu_custom_call.1} parent=47 // pred_check
          %p571 = pneg %p191
        $region50: #{tpu_custom_call.1} parent=47 // pred_check_branch
          %573 = sbr.rel (%p571) target = $region52
        $region51: #{tpu_custom_call.1} parent=47 // pred_region
          %575 = vsyncadd %s567, 0
          %s576 = smul.addr %s21, 8
          %s577 = scalar_lea.hbm %s7, %s576
          %s579 = sshll.u32 %s570, 4
          %s580 = int_to_ptr.vmem [resolvable:$true] %s579
          %s581 = sshll.u32 %s577, 4
          %s582 = int_to_ptr.hbm [resolvable:$true] %s581
          %584 = dma.vmem_to_hbm [thread:$0]  %s580, 128, %s582, %s567
        $region52: #{tpu_custom_call.1} parent=47 // pred_fallthru
          _
      $region48: #{tpu_custom_call.1} parent=5 // pred_fallthru
        _
      %p585 = scmp.le.s32.totalorder 2, %s16
      // Predicated region
      $region53: #{tpu_custom_call.1} parent=5 // pred_check
        %p586 = pneg %p585
      $region54: #{tpu_custom_call.1} parent=5 // pred_check_branch
        %588 = sbr.rel (%p586) target = $region56
      $region55: #{tpu_custom_call.1} parent=5 // pred_region
        %s589 = ssub.s32 %s16, 2
        // Predicated region
        $region57: #{tpu_custom_call.1} parent=55 // pred_check
          %p590 = pneg %p197
        $region58: #{tpu_custom_call.1} parent=55 // pred_check_branch
          %592 = sbr.rel (%p590) target = $region60
        $region59: #{tpu_custom_call.1} parent=55 // pred_region
          %s593 = sand.u32 %s182, 1
          %s594 = scalar_lea.sflag [#allocation3], %s593
          %s595 = sand.u32 %s182, 1
          %s596 = smul.addr %s595, 8
          %s597 = scalar_lea.vmem [#allocation2], %s596
          %599 = dma.done %s594, 128
        $region60: #{tpu_custom_call.1} parent=55 // pred_fallthru
          _
      $region56: #{tpu_custom_call.1} parent=5 // pred_fallthru
        _
    $region6: #{tpu_custom_call.1} parent=1 // loop_footer
      %s20 = sadd.s32 1, %s16
    $region7: #{tpu_custom_call.1} parent=1 // loop_footer_branch
      %15 = sbr.rel target = $region3
    $region8: #{tpu_custom_call.1} parent=1 // loop_exit
      _
    %600 = vsyncpa [#allocation3], 1
    %s601 = scalar_lea.sflag [#allocation3], 1
    %602 = vsyncpa %s601, 1

</llo_original>
